<compile_context>
chip_gen: v5e
topology: v5e:2x2
jax: 0.10.0
libtpu: 0.0.40
codegen_flags: <defaults>
</compile_context>

<pallas_src>
import functools

import jax
import jax.numpy as jnp
from jax import lax
from jax.experimental import pallas as pl
from jax.experimental.pallas import tpu as pltpu


def _cdiv(a, b):
    return (a + b - 1) // b


def _round_up(n, m):
    return _cdiv(n, m) * m


# ----------------------------------------------------------------------------
# Kernel
# ----------------------------------------------------------------------------
def _make_mlp_kernel(num_layers):
    """Fused [Linear -> ReLU]*(L-1) -> Linear kernel.

    refs = (x, w1, b1, ..., wL, bL, out)
      x   : (TB, in_size)   f32  -- native (batch, feature) layout, streamed
      w_l : (out_l, in_l)   f32  -- resident in VMEM (constant index_map)
      b_l : (out_l, 1)      f32
      out : (out_size, TB)  f32  -- lane-dense (batch tile on the 128-lane axis)
    """

    def kernel(*refs):
        x_ref, o_ref = refs[0], refs[-1]
        wb = refs[1:-1]

        # Layer 1: contract the feature axis of W(out,in) with x(TB,in),
        # producing the feature-major (out, TB) activation.  The operand
        # "transpose" is folded into the dot; no wrapper-side transpose/cast.
        z = lax.dot_general(
            wb[0][...], x_ref[...],
            dimension_numbers=(((1,), (1,)), ((), ())),
            preferred_element_type=jnp.float32,
        ) + wb[1][...]
        h = jnp.maximum(z, 0.0) if num_layers > 1 else z

        # Remaining layers: standard (out,in) @ (in,TB) matmuls (bias + ReLU
        # on the VPU); the last layer has no ReLU.
        for l in range(1, num_layers):
            z = lax.dot_general(
                wb[2 * l][...], h,
                dimension_numbers=(((1,), (0,)), ((), ())),
                preferred_element_type=jnp.float32,
            ) + wb[2 * l + 1][...]
            h = jnp.maximum(z, 0.0) if l < num_layers - 1 else z

        o_ref[...] = h.astype(o_ref.dtype)

    return kernel


# ----------------------------------------------------------------------------
# Per-generation tiling knobs (VMEM-driven) and tile planning
# ----------------------------------------------------------------------------
def _hw_config():
    try:
        kind = jax.devices()[0].device_kind.lower()
    except Exception:
        kind = ""
    if any(t in kind for t in ("v5 lite", "v5e", "v5lite", "v6")):
        # v5e / v6e: 128 MiB VMEM, one TensorCore per chip -> biggest tiles.
        # The (tb, 16) f32 x-block lane-pads to 128 in VMEM (~512 B/row/buf),
        # so tb=32768 needs ~32 MiB for the double-buffered input alone.
        return dict(max_tile=32768, vmem_limit=96 * 1024 * 1024, even_tiles=False)
    # v7x (64 MiB VMEM per TC, 2 TCs) and unknown chips: smaller tiles and keep
    # an even number of >=2 tiles so both TensorCores get work.
    return dict(max_tile=16384, vmem_limit=48 * 1024 * 1024, even_tiles=True)


def _plan_tiles(batch, tile_batch, even_tiles):
    """num_tiles first, then tile size: bounds padding waste to <128 rows/tile."""
    tile_batch = max(128, _round_up(tile_batch, 128))
    num_tiles = _cdiv(batch, tile_batch)
    if even_tiles:
        cand = max(2, num_tiles + (num_tiles % 2))
        tb_c = _round_up(_cdiv(batch, cand), 128)
        if (cand - 1) * tb_c < batch:          # never create an empty tile
            num_tiles = cand
    tb = _round_up(_cdiv(batch, num_tiles), 128)
    return tb, num_tiles


# ----------------------------------------------------------------------------
# Wrapper
# ----------------------------------------------------------------------------
def regression_forward(x, params, *, tile_batch=None):
    """Forward pass of the regression MLP.

    x: (batch, input_size) float32.
    params: dict with w1..wL of shape (out, in) and b1..bL of shape (out,)
            (PyTorch nn.Linear layout).
    Returns (batch, output_size), same dtype as x.
    """
    num_layers = len(params) // 2
    batch, in_size = x.shape
    out_size = params[f"w{num_layers}"].shape[0]

    cfg = _hw_config()
    if tile_batch is None:
        tile_batch = cfg["max_tile"]
    tile_batch = min(tile_batch, cfg["max_tile"])
    tb, num_tiles = _plan_tiles(batch, tile_batch, cfg["even_tiles"])

    # x is consumed in its native (batch, feature) layout.  Only the
    # single-tile case materializes a padded copy (cost bounded by one tile);
    # multi-tile ragged batches rely on Pallas partial-block handling.
    if num_tiles == 1 and tb != batch:
        x_in = jnp.pad(x, ((0, tb - batch), (0, 0)))
        out_cols = tb
    else:
        x_in = x
        out_cols = batch

    operands = [x_in]
    in_specs = [pl.BlockSpec((tb, in_size), lambda i: (i, 0))]
    flops_per_row, weight_bytes = 0, 0
    last = in_size
    for l in range(1, num_layers + 1):
        w = params[f"w{l}"].astype(jnp.float32)                  # (out_l, in_l)
        b = params[f"b{l}"].astype(jnp.float32).reshape(-1, 1)   # (out_l, 1)
        operands += [w, b]
        # Constant index_map -> fetched once, stays resident in VMEM.
        in_specs += [
            pl.BlockSpec(w.shape, lambda i: (0, 0)),
            pl.BlockSpec(b.shape, lambda i: (0, 0)),
        ]
        flops_per_row += 2 * last * w.shape[0]
        weight_bytes += (w.size + b.size) * 4
        last = w.shape[0]

    cost = pl.CostEstimate(
        flops=flops_per_row * tb * num_tiles,
        transcendentals=0,
        bytes_accessed=(x_in.size * x_in.dtype.itemsize
                        + out_size * out_cols * 4 + weight_bytes),
    )

    o_t = pl.pallas_call(
        _make_mlp_kernel(num_layers),
        out_shape=jax.ShapeDtypeStruct((out_size, out_cols), jnp.float32),
        grid=(num_tiles,),
        in_specs=in_specs,
        out_specs=pl.BlockSpec((out_size, tb), lambda i: (0, i)),
        compiler_params=pltpu.CompilerParams(
            dimension_semantics=("parallel",),   # batch tiles across TCs (v7x)
            vmem_limit_bytes=cfg["vmem_limit"],
        ),
        cost_estimate=cost,
    )(*operands)

    # (out_size, batch) -> (batch, out_size); for out_size=1 this is a reshape.
    return o_t[:, :batch].T.astype(x.dtype)


# ----------------------------------------------------------------------------
# Parameter init / references / regularization
# ----------------------------------------------------------------------------
def init_params(key, input_size, hidden_sizes, output_size):
    """PyTorch nn.Linear default init: U(-1/sqrt(fan_in), 1/sqrt(fan_in))."""
    sizes = [input_size] + list(hidden_sizes) + [output_size]
    params = {}
    for i in range(len(sizes) - 1):
        fan_in, fan_out = sizes[i], sizes[i + 1]
        key, kw, kb = jax.random.split(key, 3)
        bound = float(1.0 / jnp.sqrt(jnp.float32(fan_in)))
        params[f"w{i + 1}"] = jax.random.uniform(
            kw, (fan_out, fan_in), jnp.float32, -bound, bound)
        params[f"b{i + 1}"] = jax.random.uniform(
            kb, (fan_out,), jnp.float32, -bound, bound)
    return params


def reference_forward(x, params):
    """Pure-JAX f32 reference (matches the PyTorch forward)."""
    num_layers = len(params) // 2
    h = x
    for l in range(1, num_layers + 1):
        z = h @ params[f"w{l}"].T + params[f"b{l}"]
        h = jnp.maximum(z, 0.0) if l < num_layers else z
    return h


def regularization_loss(params, l1_lambda=0.0, l2_lambda=0.0):
    # Training-time scalar reduction over the parameters; trivial, done in
    # plain JAX rather than a Pallas kernel.
    # TODO(synk): fuse into an optimizer/training kernel if ever needed.
    l1 = sum(jnp.abs(p).sum() for p in params.values())
    l2 = sum(jnp.square(p).sum() for p in params.values())
    return l1_lambda * l1 + l2_lambda * l2


# ----------------------------------------------------------------------------
# Demo / correctness check
# ----------------------------------------------------------------------------
if __name__ == "__main__":
    # Small tabular-regression shapes consistent with the module.
    batch, input_size, hidden_sizes, output_size = 8, 16, (32, 32), 1

    key = jax.random.PRNGKey(0)
    key, kx = jax.random.split(key)
    x = jax.random.normal(kx, (batch, input_size), jnp.float32)
    params = init_params(key, input_size, hidden_sizes, output_size)

    fwd = jax.jit(regression_forward)
    out = jax.block_until_ready(fwd(x, params))
    assert out.shape == (batch, output_size)
    ref = reference_forward(x, params)
    err = float(jnp.max(jnp.abs(out - ref)))
    # Tolerance covers TPU default (bf16-operand) matmul precision.
    assert jnp.allclose(out, ref, atol=2e-2, rtol=2e-2), err

    # Second config: a 2-tile grid (2 x 256) exercising the parallel batch
    # axis with resident weights.
    batch2 = 512
    key, kx2 = jax.random.split(key)
    x2 = jax.random.normal(kx2, (batch2, input_size), jnp.float32)
    fwd2 = jax.jit(functools.partial(regression_forward, tile_batch=256))
    out2 = jax.block_until_ready(fwd2(x2, params))
    ref2 = reference_forward(x2, params)
    assert out2.shape == (batch2, output_size)
    assert jnp.allclose(out2, ref2, atol=2e-2, rtol=2e-2), float(
        jnp.max(jnp.abs(out2 - ref2)))

    _ = jax.block_until_ready(regularization_loss(params, 1e-4, 1e-4))

    print("KERNEL_OK")
</pallas_src>

<mosaic_0001>
module attributes {stable_mosaic.version = 11 : i64} {
  func.func @kernel(%arg0: i32, %arg1: memref<128x16xf32, #tpu.memory_space<vmem>>, %arg2: memref<32x16xf32, #tpu.memory_space<vmem>>, %arg3: memref<32x1xf32, #tpu.memory_space<vmem>>, %arg4: memref<32x32xf32, #tpu.memory_space<vmem>>, %arg5: memref<32x1xf32, #tpu.memory_space<vmem>>, %arg6: memref<1x32xf32, #tpu.memory_space<vmem>>, %arg7: memref<1x1xf32, #tpu.memory_space<vmem>>, %arg8: memref<1x128xf32, #tpu.memory_space<vmem>>) attributes {dimension_semantics = [#tpu.dimension_semantics<parallel>], iteration_bounds = array<i64: 1>, scalar_prefetch = 0 : i64, scratch_operands = 0 : i64, tpu.core_type = #tpu.core_type<tc>, window_params = [{transform_indices = @transform_0, window_bounds = array<i64: 128, 16>}, {pipeline_mode = #tpu.pipeline_mode<synchronous>, transform_indices = @transform_1, window_bounds = array<i64: 32, 16>}, {pipeline_mode = #tpu.pipeline_mode<synchronous>, transform_indices = @transform_2, window_bounds = array<i64: 32, 1>}, {pipeline_mode = #tpu.pipeline_mode<synchronous>, transform_indices = @transform_3, window_bounds = array<i64: 32, 32>}, {pipeline_mode = #tpu.pipeline_mode<synchronous>, transform_indices = @transform_4, window_bounds = array<i64: 32, 1>}, {pipeline_mode = #tpu.pipeline_mode<synchronous>, transform_indices = @transform_5, window_bounds = array<i64: 1, 32>}, {pipeline_mode = #tpu.pipeline_mode<synchronous>, transform_indices = @transform_6, window_bounds = array<i64: 1, 1>}, {transform_indices = @transform_7, window_bounds = array<i64: 1, 128>}]} {
    %c0 = arith.constant 0 : index
    %c0_0 = arith.constant 0 : index
    %0 = vector.load %arg2[%c0, %c0_0] : memref<32x16xf32, #tpu.memory_space<vmem>>, vector<32x16xf32>
    %c0_1 = arith.constant 0 : index
    %c0_2 = arith.constant 0 : index
    %1 = vector.load %arg1[%c0_1, %c0_2] : memref<128x16xf32, #tpu.memory_space<vmem>>, vector<128x16xf32>
    %cst = arith.constant dense<0.000000e+00> : vector<32x128xf32>
    %2 = tpu.matmul %0, %1, %cst {dimension_numbers = #tpu.dot_dimension_numbers<[1], [1], [0], [0], [0, 0, 1, 0], [], []>} : vector<32x16xf32>, vector<128x16xf32>, vector<32x128xf32> -> vector<32x128xf32>
    %c0_3 = arith.constant 0 : index
    %c0_4 = arith.constant 0 : index
    %3 = vector.load %arg3[%c0_3, %c0_4] : memref<32x1xf32, #tpu.memory_space<vmem>>, vector<32x1xf32>
    %4 = vector.broadcast %3 : vector<32x1xf32> to vector<32x128xf32>
    %5 = arith.addf %2, %4 : vector<32x128xf32>
    %cst_5 = arith.constant 0.000000e+00 : f32
    %6 = vector.broadcast %cst_5 : f32 to vector<32x128xf32>
    %7 = arith.maximumf %5, %6 : vector<32x128xf32>
    %c0_6 = arith.constant 0 : index
    %c0_7 = arith.constant 0 : index
    %8 = vector.load %arg4[%c0_6, %c0_7] : memref<32x32xf32, #tpu.memory_space<vmem>>, vector<32x32xf32>
    %cst_8 = arith.constant dense<0.000000e+00> : vector<32x128xf32>
    %9 = tpu.matmul %8, %7, %cst_8 {dimension_numbers = #tpu.dot_dimension_numbers<[1], [0], [0], [1], [0, 0, 1, 1], [], []>} : vector<32x32xf32>, vector<32x128xf32>, vector<32x128xf32> -> vector<32x128xf32>
    %c0_9 = arith.constant 0 : index
    %c0_10 = arith.constant 0 : index
    %10 = vector.load %arg5[%c0_9, %c0_10] : memref<32x1xf32, #tpu.memory_space<vmem>>, vector<32x1xf32>
    %11 = vector.broadcast %10 : vector<32x1xf32> to vector<32x128xf32>
    %12 = arith.addf %9, %11 : vector<32x128xf32>
    %cst_11 = arith.constant 0.000000e+00 : f32
    %13 = vector.broadcast %cst_11 : f32 to vector<32x128xf32>
    %14 = arith.maximumf %12, %13 : vector<32x128xf32>
    %c0_12 = arith.constant 0 : index
    %c0_13 = arith.constant 0 : index
    %15 = vector.load %arg6[%c0_12, %c0_13] : memref<1x32xf32, #tpu.memory_space<vmem>>, vector<1x32xf32>
    %cst_14 = arith.constant dense<0.000000e+00> : vector<1x128xf32>
    %16 = tpu.matmul %15, %14, %cst_14 {dimension_numbers = #tpu.dot_dimension_numbers<[1], [0], [0], [1], [0, 0, 1, 1], [], []>} : vector<1x32xf32>, vector<32x128xf32>, vector<1x128xf32> -> vector<1x128xf32>
    %c0_15 = arith.constant 0 : index
    %c0_16 = arith.constant 0 : index
    %17 = vector.load %arg7[%c0_15, %c0_16] : memref<1x1xf32, #tpu.memory_space<vmem>>, vector<1x1xf32>
    %18 = vector.broadcast %17 : vector<1x1xf32> to vector<1x128xf32>
    %19 = arith.addf %16, %18 : vector<1x128xf32>
    %c0_17 = arith.constant 0 : index
    %c0_18 = arith.constant 0 : index
    %20 = vector.load %arg8[%c0_17, %c0_18] : memref<1x128xf32, #tpu.memory_space<vmem>>, vector<1x128xf32>
    tpu.vector_store %arg8[%c0_17, %c0_18], %19 {strides = array<i32>} : memref<1x128xf32, #tpu.memory_space<vmem>>, vector<1x128xf32>,
    return
  }
  func.func @transform_0(%arg0: i32) -> (i32, i32) {
    %c0_i32 = arith.constant 0 : i32
    %c0_i32_0 = arith.constant 0 : i32
    return %arg0, %c0_i32 : i32, i32
  }
  func.func @transform_1(%arg0: i32) -> (i32, i32) {
    %c0_i32 = arith.constant 0 : i32
    %c0_i32_0 = arith.constant 0 : i32
    %c0_i32_1 = arith.constant 0 : i32
    return %c0_i32, %c0_i32_0 : i32, i32
  }
  func.func @transform_2(%arg0: i32) -> (i32, i32) {
    %c0_i32 = arith.constant 0 : i32
    %c0_i32_0 = arith.constant 0 : i32
    %c0_i32_1 = arith.constant 0 : i32
    return %c0_i32, %c0_i32_0 : i32, i32
  }
  func.func @transform_3(%arg0: i32) -> (i32, i32) {
    %c0_i32 = arith.constant 0 : i32
    %c0_i32_0 = arith.constant 0 : i32
    %c0_i32_1 = arith.constant 0 : i32
    return %c0_i32, %c0_i32_0 : i32, i32
  }
  func.func @transform_4(%arg0: i32) -> (i32, i32) {
    %c0_i32 = arith.constant 0 : i32
    %c0_i32_0 = arith.constant 0 : i32
    %c0_i32_1 = arith.constant 0 : i32
    return %c0_i32, %c0_i32_0 : i32, i32
  }
  func.func @transform_5(%arg0: i32) -> (i32, i32) {
    %c0_i32 = arith.constant 0 : i32
    %c0_i32_0 = arith.constant 0 : i32
    %c0_i32_1 = arith.constant 0 : i32
    return %c0_i32, %c0_i32_0 : i32, i32
  }
  func.func @transform_6(%arg0: i32) -> (i32, i32) {
    %c0_i32 = arith.constant 0 : i32
    %c0_i32_0 = arith.constant 0 : i32
    %c0_i32_1 = arith.constant 0 : i32
    return %c0_i32, %c0_i32_0 : i32, i32
  }
  func.func @transform_7(%arg0: i32) -> (i32, i32) {
    %c0_i32 = arith.constant 0 : i32
    %c0_i32_0 = arith.constant 0 : i32
    return %c0_i32, %arg0 : i32, i32
  }
}

</mosaic_0001>

<llo_original>
// kernel: regression_forward.1
$region0: #{regression_forward.1}
  #allocation0 [shape = 'u32[]', space=smem, size = 0x4, offset = 0x4, fixed_abs, tag = 'smem constant byte address 0x4 - core index']
  #allocation1 [shape = 'u32[72,128]{1,0:T(1,128)}', space=vmem, size = 0x9000, scoped, tag = 'internal scratch']
  #allocation2 [shape = 'f32[1,1]{1,0:T(1,128)S(1)}', space=vmem, size = 0x200, scoped, tag = 'scoped memory for regression_forward.1']
  %s0 = inlined_call_operand.vmem [shape: f32[128,16], index: 0, kind: input, shape index: {}]
  %s1 = inlined_call_operand.vmem [shape: f32[32,16], index: 1, kind: input, shape index: {}]
  %s2 = inlined_call_operand.vmem [shape: f32[32,1], index: 2, kind: input, shape index: {}]
  %s3 = inlined_call_operand.vmem [shape: f32[32,32], index: 3, kind: input, shape index: {}]
  %s4 = inlined_call_operand.vmem [shape: f32[32,1], index: 4, kind: input, shape index: {}]
  %s5 = inlined_call_operand.vmem [shape: f32[1,32], index: 5, kind: input, shape index: {}]
  %s6 = inlined_call_operand.<no memory space> [shape: f32[1,1], index: 6, kind: input, shape index: {}]
  %s7 = inlined_call_operand.vmem [shape: f32[1,128], index: 7, kind: output, shape index: {}]
  %s8 = sld [smem:[#allocation0]]
  $region38: #{regression_forward.1} parent=0
    _
  %s10 = ssub.s32 1, %s8
  %s11 = scalar_select 0, %s10, %s8
  %v12 = vstv %s6
  %13 = vst [vmem:[#allocation2] sm:$0x1] %v12
  // Predicated region
  $region2: #{regression_forward.1} parent=0 // pred_check
    _
  $region3: #{regression_forward.1} parent=0 // pred_check_branch
    %15 = sbr.rel (0) target = $region5
  $region4: #{regression_forward.1} parent=0 // pred_region
    _
  $region5: #{regression_forward.1} parent=0 // pred_fallthru
    _
  // Predicated region
  $region6: #{regression_forward.1} parent=0 // pred_check
    _
  $region7: #{regression_forward.1} parent=0 // pred_check_branch
    %17 = sbr.rel (0) target = $region9
  $region8: #{regression_forward.1} parent=0 // pred_region
    _
  $region9: #{regression_forward.1} parent=0 // pred_fallthru
    _
  // Predicated region
  $region10: #{regression_forward.1} parent=0 // pred_check
    _
  $region11: #{regression_forward.1} parent=0 // pred_check_branch
    %19 = sbr.rel (0) target = $region13
  $region12: #{regression_forward.1} parent=0 // pred_region
    _
  $region13: #{regression_forward.1} parent=0 // pred_fallthru
    _
  // Predicated region
  $region14: #{regression_forward.1} parent=0 // pred_check
    _
  $region15: #{regression_forward.1} parent=0 // pred_check_branch
    %21 = sbr.rel (0) target = $region17
  $region16: #{regression_forward.1} parent=0 // pred_region
    _
  $region17: #{regression_forward.1} parent=0 // pred_fallthru
    _
  // Predicated region
  $region18: #{regression_forward.1} parent=0 // pred_check
    _
  $region19: #{regression_forward.1} parent=0 // pred_check_branch
    %23 = sbr.rel (0) target = $region21
  $region20: #{regression_forward.1} parent=0 // pred_region
    _
  $region21: #{regression_forward.1} parent=0 // pred_fallthru
    _
  // Predicated region
  $region22: #{regression_forward.1} parent=0 // pred_check
    _
  $region23: #{regression_forward.1} parent=0 // pred_check_branch
    %25 = sbr.rel (0) target = $region25
  $region24: #{regression_forward.1} parent=0 // pred_region
    _
  $region25: #{regression_forward.1} parent=0 // pred_fallthru
    _
  // Predicated region
  $region26: #{regression_forward.1} parent=0 // pred_check
    _
  $region27: #{regression_forward.1} parent=0 // pred_check_branch
    %27 = sbr.rel (0) target = $region29
  $region28: #{regression_forward.1} parent=0 // pred_region
    _
  $region29: #{regression_forward.1} parent=0 // pred_fallthru
    _
  %v28 = vld [vmem:[%s1] sm:$0xff]
  %v29 = vld [vmem:[%s1 + $0x8] sm:$0xff]
  %v30 = vld [vmem:[%s1 + $0x10] sm:$0xff]
  %v31 = vld [vmem:[%s1 + $0x18] sm:$0xff]
  %v32 = vld [vmem:[%s0] sm:$0xff]
  %v33 = vld [vmem:[%s0 + $0x8] sm:$0xff]
  %v34 = vld [vmem:[%s0 + $0x10] sm:$0xff]
  %v35 = vld [vmem:[%s0 + $0x18] sm:$0xff]
  %v36 = vld [vmem:[%s0 + $0x20] sm:$0xff]
  %v37 = vld [vmem:[%s0 + $0x28] sm:$0xff]
  %v38 = vld [vmem:[%s0 + $0x30] sm:$0xff]
  %v39 = vld [vmem:[%s0 + $0x38] sm:$0xff]
  %v40 = vld [vmem:[%s0 + $0x40] sm:$0xff]
  %v41 = vld [vmem:[%s0 + $0x48] sm:$0xff]
  %v42 = vld [vmem:[%s0 + $0x50] sm:$0xff]
  %v43 = vld [vmem:[%s0 + $0x58] sm:$0xff]
  %v44 = vld [vmem:[%s0 + $0x60] sm:$0xff]
  %v45 = vld [vmem:[%s0 + $0x68] sm:$0xff]
  %v46 = vld [vmem:[%s0 + $0x70] sm:$0xff]
  %v47 = vld [vmem:[%s0 + $0x78] sm:$0xff]
  %v48 = vld [vmem:[%s2] sm:$0xff]
  %v49 = vld [vmem:[%s2 + $0x8] sm:$0xff]
  %v50 = vld [vmem:[%s2 + $0x10] sm:$0xff]
  %v51 = vld [vmem:[%s2 + $0x18] sm:$0xff]
  %53 = vset.pattern.permute.xlu0 0
  %54 = vperm.xlu0 %53, %v48
  %v55 = vpop.permute.xlu0 %54
  %58 = vset.pattern.permute.xlu0 0
  %59 = vperm.xlu0 %58, %v49
  %v60 = vpop.permute.xlu0 %59
  %63 = vset.pattern.permute.xlu0 0
  %64 = vperm.xlu0 %63, %v50
  %v65 = vpop.permute.xlu0 %64
  %68 = vset.pattern.permute.xlu0 0
  %69 = vperm.xlu0 %68, %v51
  %v70 = vpop.permute.xlu0 %69
  %vm72 = vcmask 130048
  %v74 = vsel %vm72, %v28, 0
  %v77 = vsel %vm72, %v29, 0
  %v80 = vsel %vm72, %v30, 0
  %v83 = vsel %vm72, %v31, 0
  %v86 = vsel %vm72, %v32, 0
  %v89 = vsel %vm72, %v33, 0
  %v92 = vsel %vm72, %v34, 0
  %v95 = vsel %vm72, %v35, 0
  %v98 = vsel %vm72, %v36, 0
  %v101 = vsel %vm72, %v37, 0
  %v104 = vsel %vm72, %v38, 0
  %v107 = vsel %vm72, %v39, 0
  %v110 = vsel %vm72, %v40, 0
  %v113 = vsel %vm72, %v41, 0
  %v116 = vsel %vm72, %v42, 0
  %v119 = vsel %vm72, %v43, 0
  %v122 = vsel %vm72, %v44, 0
  %v125 = vsel %vm72, %v45, 0
  %v128 = vsel %vm72, %v46, 0
  %v131 = vsel %vm72, %v47, 0
  %133 = vmatpush.xpose.msra.mxu0 %v131
  %134 = vmatpush.xpose.msra.mxu0 %v128
  %135 = vmatpush.xpose.msra.mxu0 %v125
  %136 = vmatpush.xpose.msra.mxu0 %v122
  %137 = vmatpush.xpose.msra.mxu0 %v119
  %138 = vmatpush.xpose.msra.mxu0 %v116
  %139 = vmatpush.xpose.msra.mxu0 %v113
  %140 = vmatpush.xpose.msra.mxu0 %v110
  %141 = vmatpush.xpose.msra.mxu0 %v107
  %142 = vmatpush.xpose.msra.mxu0 %v104
  %143 = vmatpush.xpose.msra.mxu0 %v101
  %144 = vmatpush.xpose.msra.mxu0 %v98
  %145 = vmatpush.xpose.msra.mxu0 %v95
  %146 = vmatpush.xpose.msra.mxu0 %v92
  %147 = vmatpush.xpose.msra.mxu0 %v89
  %148 = vmatpush.xpose.msra.mxu0 %v86
  %149 = vmatmul.f32.gmra.mxu0 %v74
  %v150 = vpop.f32.mrf.mxu0
  %v151 = vadd.f32 %v55, %v150
  %152 = vmatmul.f32.gmra.mxu0 %v77
  %v153 = vpop.f32.mrf.mxu0
  %v154 = vadd.f32 %v60, %v153
  %155 = vmatmul.f32.gmra.mxu0 %v80
  %v156 = vpop.f32.mrf.mxu0
  %v157 = vadd.f32 %v65, %v156
  %158 = vmatmul.f32.gmra.mxu0 %v83
  %v159 = vpop.f32.mrf.mxu0
  %v160 = vadd.f32 %v70, %v159
  %161 = vdwg.mxu0
  %v162 = vmax.f32 %v151, 0.0
  %v163 = vmax.f32 %v154, 0.0
  %v164 = vmax.f32 %v157, 0.0
  %v165 = vmax.f32 %v160, 0.0
  %v166 = vld [vmem:[%s3] sm:$0xff]
  %v167 = vld [vmem:[%s3 + $0x8] sm:$0xff]
  %v168 = vld [vmem:[%s3 + $0x10] sm:$0xff]
  %v169 = vld [vmem:[%s3 + $0x18] sm:$0xff]
  %v170 = vld [vmem:[%s4] sm:$0xff]
  %v171 = vld [vmem:[%s4 + $0x8] sm:$0xff]
  %v172 = vld [vmem:[%s4 + $0x10] sm:$0xff]
  %v173 = vld [vmem:[%s4 + $0x18] sm:$0xff]
  %175 = vset.pattern.permute.xlu0 0
  %176 = vperm.xlu0 %175, %v170
  %v177 = vpop.permute.xlu0 %176
  %180 = vset.pattern.permute.xlu0 0
  %181 = vperm.xlu0 %180, %v171
  %v182 = vpop.permute.xlu0 %181
  %185 = vset.pattern.permute.xlu0 0
  %186 = vperm.xlu0 %185, %v172
  %v187 = vpop.permute.xlu0 %186
  %190 = vset.pattern.permute.xlu0 0
  %191 = vperm.xlu0 %190, %v173
  %v192 = vpop.permute.xlu0 %191
  %vm194 = vcmask 261120
  %v196 = vsel %vm194, %v166, 0
  %v199 = vsel %vm194, %v167, 0
  %v202 = vsel %vm194, %v168, 0
  %v205 = vsel %vm194, %v169, 0
  %207 = vmatpush.msra.mxu0 0.0
  %208 = vmatpush.msra.mxu0 0.0
  %209 = vmatpush.msra.mxu0 0.0
  %210 = vmatpush.msra.mxu0 0.0
  %211 = vmatpush.msra.mxu0 0.0
  %212 = vmatpush.msra.mxu0 0.0
  %213 = vmatpush.msra.mxu0 0.0
  %214 = vmatpush.msra.mxu0 0.0
  %215 = vmatpush.msra.mxu0 0.0
  %216 = vmatpush.msra.mxu0 0.0
  %217 = vmatpush.msra.mxu0 0.0
  %218 = vmatpush.msra.mxu0 0.0
  %219 = vmatpush.msra.mxu0 %v165
  %220 = vmatpush.msra.mxu0 %v164
  %221 = vmatpush.msra.mxu0 %v163
  %222 = vmatpush.msra.mxu0 %v162
  %223 = vmatmul.f32.gmra.mxu0 %v196
  %v224 = vpop.f32.mrf.mxu0
  %v225 = vadd.f32 %v177, %v224
  %226 = vmatmul.f32.gmra.mxu0 %v199
  %v227 = vpop.f32.mrf.mxu0
  %v228 = vadd.f32 %v182, %v227
  %229 = vmatmul.f32.gmra.mxu0 %v202
  %v230 = vpop.f32.mrf.mxu0
  %v231 = vadd.f32 %v187, %v230
  %232 = vmatmul.f32.gmra.mxu0 %v205
  %v233 = vpop.f32.mrf.mxu0
  %v234 = vadd.f32 %v192, %v233
  %235 = vdwg.mxu0
  %v236 = vmax.f32 %v225, 0.0
  %v237 = vmax.f32 %v228, 0.0
  %v238 = vmax.f32 %v231, 0.0
  %v239 = vmax.f32 %v234, 0.0
  %v240 = vld [vmem:[%s5] sm:$0x1]
  %v241 = vld [vmem:[#allocation2] sm:$0x1]
  %243 = vset.pattern.permute.xlu0 0
  %244 = vperm.xlu0 %243, %v241
  %v245 = vpop.permute.xlu0 %244
  %v247 = vperm.slane %v245, 0
  %v249 = vsel %vm194, %v240, 0
  %251 = vmatpush.msra.mxu0 0.0
  %252 = vmatpush.msra.mxu0 0.0
  %253 = vmatpush.msra.mxu0 0.0
  %254 = vmatpush.msra.mxu0 0.0
  %255 = vmatpush.msra.mxu0 0.0
  %256 = vmatpush.msra.mxu0 0.0
  %257 = vmatpush.msra.mxu0 0.0
  %258 = vmatpush.msra.mxu0 0.0
  %259 = vmatpush.msra.mxu0 0.0
  %260 = vmatpush.msra.mxu0 0.0
  %261 = vmatpush.msra.mxu0 0.0
  %262 = vmatpush.msra.mxu0 0.0
  %263 = vmatpush.msra.mxu0 %v239
  %264 = vmatpush.msra.mxu0 %v238
  %265 = vmatpush.msra.mxu0 %v237
  %266 = vmatpush.msra.mxu0 %v236
  %267 = vmatmul.f32.gmra.mxu0 %v249
  %v268 = vpop.f32.mrf.mxu0
  %v269 = vadd.f32 %v247, %v268
  %270 = vdwg.mxu0
  %271 = vst [vmem:[%s7] sm:$0x1] %v269
  // Predicated region
  $region30: #{regression_forward.1} parent=0 // pred_check
    _
  $region31: #{regression_forward.1} parent=0 // pred_check_branch
    %273 = sbr.rel (0) target = $region33
  $region32: #{regression_forward.1} parent=0 // pred_region
    _
  $region33: #{regression_forward.1} parent=0 // pred_fallthru
    _
  // Predicated region
  $region34: #{regression_forward.1} parent=0 // pred_check
    _
  $region35: #{regression_forward.1} parent=0 // pred_check_branch
    %275 = sbr.rel (0) target = $region37
  $region36: #{regression_forward.1} parent=0 // pred_region
    _
  $region37: #{regression_forward.1} parent=0 // pred_fallthru
    _

</llo_original>
